<compile_context>
chip_gen: v7x
topology: tpu7x:2x2x1
jax: 0.10.0
libtpu: 0.0.40
codegen_flags: <defaults>
</compile_context>

<pallas_src>
import functools

import jax
import jax.numpy as jnp
from jax.experimental import pallas as pl
from jax.experimental.pallas import tpu as pltpu

# ----------------------------- configuration -------------------------------
C_IN = 13          # backbone input channels (fixed by .expand(13, ...) in forward)
C_FEAT = 32        # pixel-wise feature channels
C_EMB = 16         # embedded feature channels (embedded_features_shape[0])
MASK_TH = 0.1      # mask_features_th (must stay > 0 for the fused mask algebra)
TILE_N_MAX = 16384 # pixels per grid step (lane axis)

# TODO(synk): pseudo_label_generator (GradCam-based) and the
#             mask_pixel_wise_features=False branch (full classifier path) are
#             out of scope; `self.feature_layer` is only used by GradCam.
# TODO(synk): L2-normalization uses rsqrt(sum+1e-6); PyTorch F.normalize clamps the
#             norm at eps instead, so near-zero feature pixels can differ slightly.


# ------------------------------- fused kernel --------------------------------
def _fused_kernel(x_ref, lab_ref, w1t_ref, w1sum_ref, b1_ref, w2t_ref, b2_ref,
                  th_ref, o_ref, *, group_classes):
    """One (batch, pixel-tile) grid step; pixels live on the 128-wide lane axis.

      pwf   = L2norm(ReLU(W1^T @ x + b1))                         # (C_FEAT, T)
      for each class group g (static unroll, pwf stays resident in vregs):
        lbc      = sum_c where(label == c, label, -1)             # (1, T)
        masked   = where(lbc * w1_sum >= MASK_TH - b1, pwf, 0)    # fused mask
        out[g]   = ReLU(W2^T @ masked + b2)                       # (C_EMB, T)
    """
    x = x_ref[...]                                   # (C_IN, T)
    b1 = b1_ref[...]                                 # (C_FEAT, 1)
    pwf = jnp.dot(w1t_ref[...], x, preferred_element_type=jnp.float32) + b1
    pwf = jnp.maximum(pwf, 0.0)
    inv = jax.lax.rsqrt(jnp.sum(pwf * pwf, axis=0, keepdims=True) + 1e-6)
    pwf = pwf * inv                                  # (C_FEAT, T), L2-normalized per pixel

    lab = lab_ref[...]                               # (1, T) float class ids
    w1sum = w1sum_ref[...]                           # (C_FEAT, 1)  sum_i W1[i,:]
    th = th_ref[...]                                 # (C_FEAT, 1)  MASK_TH - b1
    w2t = w2t_ref[...]                               # (C_EMB, C_FEAT)
    b2 = b2_ref[...]                                 # (C_EMB, 1)

    for g, classes in enumerate(group_classes):      # small G -> static unroll
        lbc = None                                   # (1, T) label-by-class value
        for class_ in classes:
            t = jnp.where(lab == class_, lab, -1.0)
            lbc = t if lbc is None else lbc + t
        # ReLU(lbc*w1sum + b1) >= MASK_TH  <=>  lbc*w1sum >= MASK_TH - b1  (MASK_TH > 0)
        masked = jnp.where(lbc * w1sum >= th, pwf, 0.0)          # (C_FEAT, T)
        emb = jnp.dot(w2t, masked, preferred_element_type=jnp.float32) + b2
        o_ref[g] = jnp.maximum(emb, 0.0)             # (C_EMB, T), lane-dense store


# ------------------------------- wrapper --------------------------------------
def fused_masked_embeddings(x, lab, params, group_classes):
    """x: [B, C_IN, N_pix]; lab: [B, 1, N_pix] -> [B, G, C_EMB, N_pix]."""
    assert MASK_TH > 0.0  # required by the fused (ReLU-free) mask comparison
    b, _, hw = x.shape
    g = len(group_classes)

    w1, b1, w2, b2 = params["w1"], params["b1"], params["w2"], params["b2"]
    w1t = jnp.transpose(w1)                          # (C_FEAT, C_IN)
    w1sum = jnp.sum(w1, axis=0).reshape(C_FEAT, 1)   # conv over 13 identical channels
    b1c = b1.reshape(C_FEAT, 1)
    th = MASK_TH - b1c                               # precomputed mask threshold
    w2t = jnp.transpose(w2)                          # (C_EMB, C_FEAT)
    b2c = b2.reshape(C_EMB, 1)

    # Tile selection: whole row if it fits, else 16K-pixel tiles with a partial
    # (Pallas-clipped) tail.  No wrapper pad/slice passes.
    tile_n = hw if hw <= TILE_N_MAX else TILE_N_MAX
    n_tiles = pl.cdiv(hw, tile_n)
    # keep >= 2 grid steps when possible so v7x's second TensorCore isn't idle
    if b * n_tiles < 2 and hw % 256 == 0:
        tile_n = hw // 2
        n_tiles = 2

    kernel = functools.partial(_fused_kernel, group_classes=group_classes)
    return pl.pallas_call(
        kernel,
        out_shape=jax.ShapeDtypeStruct((b, g, C_EMB, hw), jnp.float32),
        grid_spec=pltpu.PrefetchScalarGridSpec(
            num_scalar_prefetch=0,
            grid=(b, n_tiles),
            in_specs=[
                pl.BlockSpec((pl.Squeezed(), C_IN, tile_n), lambda bi, i: (bi, 0, i)),
                pl.BlockSpec((pl.Squeezed(), 1, tile_n), lambda bi, i: (bi, 0, i)),
                pl.BlockSpec((C_FEAT, C_IN), lambda bi, i: (0, 0)),   # W1^T (resident)
                pl.BlockSpec((C_FEAT, 1), lambda bi, i: (0, 0)),      # sum(W1, axis=in)
                pl.BlockSpec((C_FEAT, 1), lambda bi, i: (0, 0)),      # b1
                pl.BlockSpec((C_EMB, C_FEAT), lambda bi, i: (0, 0)),  # W2^T
                pl.BlockSpec((C_EMB, 1), lambda bi, i: (0, 0)),       # b2
                pl.BlockSpec((C_FEAT, 1), lambda bi, i: (0, 0)),      # MASK_TH - b1
            ],
            out_specs=pl.BlockSpec((pl.Squeezed(), g, C_EMB, tile_n),
                                   lambda bi, i: (bi, 0, 0, i)),
        ),
        compiler_params=pltpu.CompilerParams(
            dimension_semantics=("parallel", "parallel"),
            # double-buffered x + label + out at tile=16384, G=3 is ~8 MiB;
            # explicit limit keeps us well inside every chip's VMEM.
            vmem_limit_bytes=32 * 1024 * 1024,
        ),
    )(x, lab, w1t, w1sum, b1c, w2t, b2c, th)


def fsl_sem_seg_forward(img, label, params, n_target_classes, target_labels_map):
    """img: [B, 13, H, W] (NCHW f32); label: [B, 1, H, W] or [B, H, W] (f32 class ids).

    Returns [B, n_target_classes, C_EMB, H, W] (PyTorch convention)."""
    b, c, h, w = img.shape
    assert c == C_IN
    if label.ndim == 3:
        label = label[:, None]
    hw = h * w

    x = img.reshape(b, C_IN, hw)                             # free view (NCHW)
    lab = label.reshape(b, 1, hw).astype(jnp.float32)        # free view

    groups = list(target_labels_map.items())                 # [(classes_tuple, target)]
    targets = [tl for _, tl in groups]
    bijection = (len(groups) == n_target_classes
                 and sorted(targets) == list(range(n_target_classes)))

    if bijection:
        # order groups by target label so the kernel writes the final layout directly
        ordered = sorted(groups, key=lambda kv: kv[1])
        group_classes = tuple(tuple(float(ci) for ci in k) for k, _ in ordered)
        emb = fused_masked_embeddings(x, lab, params, group_classes)
        return emb.reshape(b, n_target_classes, C_EMB, h, w)

    # fallback: duplicate / partial target labels -> zeros + scatter ("last wins",
    # same as the reference loop)
    group_classes = tuple(tuple(float(ci) for ci in k) for k, _ in groups)
    emb = fused_masked_embeddings(x, lab, params, group_classes)   # [B, G, C_EMB, HW]
    out = jnp.zeros((b, n_target_classes, C_EMB, hw), jnp.float32)
    for gi, (_, target_label) in enumerate(groups):
        out = out.at[:, target_label].set(emb[:, gi])
    return out.reshape(b, n_target_classes, C_EMB, h, w)


# ----------------------------- pure-JAX reference ----------------------------
def _ref_pwf(x_nchw, w1, b1, normalize):
    y = jnp.einsum("bihw,io->bohw", x_nchw, w1) + b1[0][None, :, None, None]
    y = jnp.maximum(y, 0.0)
    if normalize:
        y = y * jax.lax.rsqrt(jnp.sum(y * y, axis=1, keepdims=True) + 1e-6)
    return y


def _ref_head(f_nchw, w2, b2):
    y = jnp.einsum("bihw,io->bohw", f_nchw, w2) + b2[0][None, :, None, None]
    return jnp.maximum(y, 0.0)


def reference_forward(img, label, params, n_target_classes, target_labels_map):
    b, _, h, w = img.shape
    if label.ndim == 3:
        label = label[:, None]
    pwf = _ref_pwf(img, params["w1"], params["b1"], True)
    out = jnp.zeros((b, n_target_classes, C_EMB, h, w), jnp.float32)
    for classes_in_label, target_label in target_labels_map.items():
        lbc = jnp.zeros_like(label)
        for class_ in classes_in_label:
            lbc = lbc + jnp.where(label == class_, label, -1.0)
        labels_by_class = jnp.broadcast_to(lbc, (b, C_IN, h, w))
        mf = _ref_pwf(labels_by_class, params["w1"], params["b1"], False)
        mf = jnp.where(mf >= MASK_TH, 1.0, 0.0)
        mf = pwf * mf
        out = out.at[:, target_label].set(_ref_head(mf, params["w2"], params["b2"]))
    return out


# ---------------------------------- main -------------------------------------
if __name__ == "__main__":
    B, H, W = 2, 16, 16

    key = jax.random.PRNGKey(0)
    k1, k2, k3, k4, kimg, klab = jax.random.split(key, 6)
    params = {
        "w1": jax.random.normal(k1, (C_IN, C_FEAT), jnp.float32) * 0.1,
        "b1": jax.random.normal(k2, (1, C_FEAT), jnp.float32) * 0.1,
        "w2": jax.random.normal(k3, (C_FEAT, C_EMB), jnp.float32) * 0.1,
        "b2": jax.random.normal(k4, (1, C_EMB), jnp.float32) * 0.1,
    }
    img = jax.random.normal(kimg, (B, C_IN, H, W), jnp.float32)
    label = jax.random.randint(klab, (B, 1, H, W), 0, 3).astype(jnp.float32)

    scenarios = [
        # (n_target_classes, target_labels_map)
        (3, {(0,): 0, (1,): 1, (2,): 2}),      # bijection, direct-layout path
        (2, {(0, 1): 0, (2,): 1}),             # multi-class group, direct-layout path
        (3, {(0,): 1, (2,): 2}),               # non-bijective map -> scatter fallback
    ]

    for n_tc, tl_map in scenarios:
        out = fsl_sem_seg_forward(img, label, params, n_tc, tl_map)
        out = jax.block_until_ready(out)
        ref = reference_forward(img, label, params, n_tc, tl_map)
        assert out.shape == (B, n_tc, C_EMB, H, W), out.shape
        assert jnp.allclose(out, ref, rtol=1e-5, atol=1e-5), \
            float(jnp.max(jnp.abs(out - ref)))

    print("KERNEL_OK")
</pallas_src>

<mosaic_0001>
module attributes {stable_mosaic.version = 11 : i64} {
  func.func @_fused_kernel(%arg0: i32, %arg1: i32, %arg2: memref<1x13x256xf32, #tpu.memory_space<vmem>>, %arg3: memref<1x1x256xf32, #tpu.memory_space<vmem>>, %arg4: memref<32x13xf32, #tpu.memory_space<vmem>>, %arg5: memref<32x1xf32, #tpu.memory_space<vmem>>, %arg6: memref<32x1xf32, #tpu.memory_space<vmem>>, %arg7: memref<16x32xf32, #tpu.memory_space<vmem>>, %arg8: memref<16x1xf32, #tpu.memory_space<vmem>>, %arg9: memref<32x1xf32, #tpu.memory_space<vmem>>, %arg10: memref<1x3x16x256xf32, #tpu.memory_space<vmem>>) attributes {dimension_semantics = [#tpu.dimension_semantics<parallel>, #tpu.dimension_semantics<parallel>], iteration_bounds = array<i64: 2, 1>, scalar_prefetch = 0 : i64, scratch_operands = 0 : i64, tpu.core_type = #tpu.core_type<tc>, window_params = [{transform_indices = @transform_0, window_bounds = array<i64: 1, 13, 256>}, {transform_indices = @transform_1, window_bounds = array<i64: 1, 1, 256>}, {pipeline_mode = #tpu.pipeline_mode<synchronous>, transform_indices = @transform_2, window_bounds = array<i64: 32, 13>}, {pipeline_mode = #tpu.pipeline_mode<synchronous>, transform_indices = @transform_3, window_bounds = array<i64: 32, 1>}, {pipeline_mode = #tpu.pipeline_mode<synchronous>, transform_indices = @transform_4, window_bounds = array<i64: 32, 1>}, {pipeline_mode = #tpu.pipeline_mode<synchronous>, transform_indices = @transform_5, window_bounds = array<i64: 16, 32>}, {pipeline_mode = #tpu.pipeline_mode<synchronous>, transform_indices = @transform_6, window_bounds = array<i64: 16, 1>}, {pipeline_mode = #tpu.pipeline_mode<synchronous>, transform_indices = @transform_7, window_bounds = array<i64: 32, 1>}, {transform_indices = @transform_8, window_bounds = array<i64: 1, 3, 16, 256>}]} {
    %c0 = arith.constant 0 : index
    %c0_0 = arith.constant 0 : index
    %c0_1 = arith.constant 0 : index
    %0 = vector.load %arg2[%c0, %c0_0, %c0_1] : memref<1x13x256xf32, #tpu.memory_space<vmem>>, vector<1x13x256xf32>
    %1 = vector.shape_cast %0 : vector<1x13x256xf32> to vector<13x256xf32>
    %c0_2 = arith.constant 0 : index
    %c0_3 = arith.constant 0 : index
    %2 = vector.load %arg6[%c0_2, %c0_3] : memref<32x1xf32, #tpu.memory_space<vmem>>, vector<32x1xf32>
    %c0_4 = arith.constant 0 : index
    %c0_5 = arith.constant 0 : index
    %3 = vector.load %arg4[%c0_4, %c0_5] : memref<32x13xf32, #tpu.memory_space<vmem>>, vector<32x13xf32>
    %cst = arith.constant dense<0.000000e+00> : vector<32x256xf32>
    %4 = tpu.matmul %3, %1, %cst {dimension_numbers = #tpu.dot_dimension_numbers<[1], [0], [0], [1], [0, 0, 1, 1], [], []>} : vector<32x13xf32>, vector<13x256xf32>, vector<32x256xf32> -> vector<32x256xf32>
    %5 = vector.broadcast %2 : vector<32x1xf32> to vector<32x256xf32>
    %6 = arith.addf %4, %5 : vector<32x256xf32>
    %cst_6 = arith.constant 0.000000e+00 : f32
    %7 = vector.broadcast %cst_6 : f32 to vector<32x256xf32>
    %8 = arith.maximumf %6, %7 : vector<32x256xf32>
    %9 = arith.mulf %8, %8 : vector<32x256xf32>
    %cst_7 = arith.constant dense<0.000000e+00> : vector<256xf32>
    %10 = vector.multi_reduction <add>, %9, %cst_7 [0] : vector<32x256xf32> to vector<256xf32>
    %11 = vector.shape_cast %10 : vector<256xf32> to vector<1x256xf32>
    %cst_8 = arith.constant 9.99999997E-7 : f32
    %12 = vector.broadcast %cst_8 : f32 to vector<1x256xf32>
    %13 = arith.addf %11, %12 : vector<1x256xf32>
    %14 = math.rsqrt %13 : vector<1x256xf32>
    %15 = vector.broadcast %14 : vector<1x256xf32> to vector<32x256xf32>
    %16 = arith.mulf %8, %15 : vector<32x256xf32>
    %c0_9 = arith.constant 0 : index
    %c0_10 = arith.constant 0 : index
    %c0_11 = arith.constant 0 : index
    %17 = vector.load %arg3[%c0_9, %c0_10, %c0_11] : memref<1x1x256xf32, #tpu.memory_space<vmem>>, vector<1x1x256xf32>
    %18 = vector.shape_cast %17 : vector<1x1x256xf32> to vector<1x256xf32>
    %c0_12 = arith.constant 0 : index
    %c0_13 = arith.constant 0 : index
    %19 = vector.load %arg5[%c0_12, %c0_13] : memref<32x1xf32, #tpu.memory_space<vmem>>, vector<32x1xf32>
    %c0_14 = arith.constant 0 : index
    %c0_15 = arith.constant 0 : index
    %20 = vector.load %arg9[%c0_14, %c0_15] : memref<32x1xf32, #tpu.memory_space<vmem>>, vector<32x1xf32>
    %c0_16 = arith.constant 0 : index
    %c0_17 = arith.constant 0 : index
    %21 = vector.load %arg7[%c0_16, %c0_17] : memref<16x32xf32, #tpu.memory_space<vmem>>, vector<16x32xf32>
    %c0_18 = arith.constant 0 : index
    %c0_19 = arith.constant 0 : index
    %22 = vector.load %arg8[%c0_18, %c0_19] : memref<16x1xf32, #tpu.memory_space<vmem>>, vector<16x1xf32>
    %cst_20 = arith.constant 0.000000e+00 : f32
    %23 = vector.broadcast %cst_20 : f32 to vector<1x256xf32>
    %24 = arith.cmpf oeq, %18, %23 : vector<1x256xf32>
    %cst_21 = arith.constant -1.000000e+00 : f32
    %25 = vector.broadcast %cst_21 : f32 to vector<1x256xf32>
    %26 = arith.select %24, %18, %25 : vector<1x256xi1>, vector<1x256xf32>
    %27 = vector.broadcast %26 : vector<1x256xf32> to vector<32x256xf32>
    %28 = vector.broadcast %19 : vector<32x1xf32> to vector<32x256xf32>
    %29 = arith.mulf %27, %28 : vector<32x256xf32>
    %30 = vector.broadcast %20 : vector<32x1xf32> to vector<32x256xf32>
    %31 = arith.cmpf oge, %29, %30 : vector<32x256xf32>
    %cst_22 = arith.constant 0.000000e+00 : f32
    %32 = vector.broadcast %cst_22 : f32 to vector<32x256xf32>
    %33 = arith.select %31, %16, %32 : vector<32x256xi1>, vector<32x256xf32>
    %cst_23 = arith.constant dense<0.000000e+00> : vector<16x256xf32>
    %34 = tpu.matmul %21, %33, %cst_23 {dimension_numbers = #tpu.dot_dimension_numbers<[1], [0], [0], [1], [0, 0, 1, 1], [], []>} : vector<16x32xf32>, vector<32x256xf32>, vector<16x256xf32> -> vector<16x256xf32>
    %35 = vector.broadcast %22 : vector<16x1xf32> to vector<16x256xf32>
    %36 = arith.addf %34, %35 : vector<16x256xf32>
    %cst_24 = arith.constant 0.000000e+00 : f32
    %37 = vector.broadcast %cst_24 : f32 to vector<16x256xf32>
    %38 = arith.maximumf %36, %37 : vector<16x256xf32>
    %c0_25 = arith.constant 0 : index
    %c0_26 = arith.constant 0 : index
    %c0_27 = arith.constant 0 : index
    %c0_28 = arith.constant 0 : index
    %39 = vector.load %arg10[%c0_25, %c0_26, %c0_27, %c0_28] : memref<1x3x16x256xf32, #tpu.memory_space<vmem>>, vector<1x1x16x256xf32>
    %40 = vector.shape_cast %39 : vector<1x1x16x256xf32> to vector<16x256xf32>
    %41 = vector.shape_cast %38 : vector<16x256xf32> to vector<1x1x16x256xf32>
    tpu.vector_store %arg10[%c0_25, %c0_26, %c0_27, %c0_28], %41 {strides = array<i32>} : memref<1x3x16x256xf32, #tpu.memory_space<vmem>>, vector<1x1x16x256xf32>,
    %cst_29 = arith.constant 1.000000e+00 : f32
    %42 = vector.broadcast %cst_29 : f32 to vector<1x256xf32>
    %43 = arith.cmpf oeq, %18, %42 : vector<1x256xf32>
    %cst_30 = arith.constant -1.000000e+00 : f32
    %44 = vector.broadcast %cst_30 : f32 to vector<1x256xf32>
    %45 = arith.select %43, %18, %44 : vector<1x256xi1>, vector<1x256xf32>
    %46 = vector.broadcast %45 : vector<1x256xf32> to vector<32x256xf32>
    %47 = vector.broadcast %19 : vector<32x1xf32> to vector<32x256xf32>
    %48 = arith.mulf %46, %47 : vector<32x256xf32>
    %49 = vector.broadcast %20 : vector<32x1xf32> to vector<32x256xf32>
    %50 = arith.cmpf oge, %48, %49 : vector<32x256xf32>
    %cst_31 = arith.constant 0.000000e+00 : f32
    %51 = vector.broadcast %cst_31 : f32 to vector<32x256xf32>
    %52 = arith.select %50, %16, %51 : vector<32x256xi1>, vector<32x256xf32>
    %cst_32 = arith.constant dense<0.000000e+00> : vector<16x256xf32>
    %53 = tpu.matmul %21, %52, %cst_32 {dimension_numbers = #tpu.dot_dimension_numbers<[1], [0], [0], [1], [0, 0, 1, 1], [], []>} : vector<16x32xf32>, vector<32x256xf32>, vector<16x256xf32> -> vector<16x256xf32>
    %54 = vector.broadcast %22 : vector<16x1xf32> to vector<16x256xf32>
    %55 = arith.addf %53, %54 : vector<16x256xf32>
    %cst_33 = arith.constant 0.000000e+00 : f32
    %56 = vector.broadcast %cst_33 : f32 to vector<16x256xf32>
    %57 = arith.maximumf %55, %56 : vector<16x256xf32>
    %c0_34 = arith.constant 0 : index
    %c1 = arith.constant 1 : index
    %c0_35 = arith.constant 0 : index
    %c0_36 = arith.constant 0 : index
    %58 = vector.load %arg10[%c0_34, %c1, %c0_35, %c0_36] : memref<1x3x16x256xf32, #tpu.memory_space<vmem>>, vector<1x1x16x256xf32>
    %59 = vector.shape_cast %58 : vector<1x1x16x256xf32> to vector<16x256xf32>
    %60 = vector.shape_cast %57 : vector<16x256xf32> to vector<1x1x16x256xf32>
    tpu.vector_store %arg10[%c0_34, %c1, %c0_35, %c0_36], %60 {strides = array<i32>} : memref<1x3x16x256xf32, #tpu.memory_space<vmem>>, vector<1x1x16x256xf32>,
    %cst_37 = arith.constant 2.000000e+00 : f32
    %61 = vector.broadcast %cst_37 : f32 to vector<1x256xf32>
    %62 = arith.cmpf oeq, %18, %61 : vector<1x256xf32>
    %cst_38 = arith.constant -1.000000e+00 : f32
    %63 = vector.broadcast %cst_38 : f32 to vector<1x256xf32>
    %64 = arith.select %62, %18, %63 : vector<1x256xi1>, vector<1x256xf32>
    %65 = vector.broadcast %64 : vector<1x256xf32> to vector<32x256xf32>
    %66 = vector.broadcast %19 : vector<32x1xf32> to vector<32x256xf32>
    %67 = arith.mulf %65, %66 : vector<32x256xf32>
    %68 = vector.broadcast %20 : vector<32x1xf32> to vector<32x256xf32>
    %69 = arith.cmpf oge, %67, %68 : vector<32x256xf32>
    %cst_39 = arith.constant 0.000000e+00 : f32
    %70 = vector.broadcast %cst_39 : f32 to vector<32x256xf32>
    %71 = arith.select %69, %16, %70 : vector<32x256xi1>, vector<32x256xf32>
    %cst_40 = arith.constant dense<0.000000e+00> : vector<16x256xf32>
    %72 = tpu.matmul %21, %71, %cst_40 {dimension_numbers = #tpu.dot_dimension_numbers<[1], [0], [0], [1], [0, 0, 1, 1], [], []>} : vector<16x32xf32>, vector<32x256xf32>, vector<16x256xf32> -> vector<16x256xf32>
    %73 = vector.broadcast %22 : vector<16x1xf32> to vector<16x256xf32>
    %74 = arith.addf %72, %73 : vector<16x256xf32>
    %cst_41 = arith.constant 0.000000e+00 : f32
    %75 = vector.broadcast %cst_41 : f32 to vector<16x256xf32>
    %76 = arith.maximumf %74, %75 : vector<16x256xf32>
    %c0_42 = arith.constant 0 : index
    %c2 = arith.constant 2 : index
    %c0_43 = arith.constant 0 : index
    %c0_44 = arith.constant 0 : index
    %77 = vector.load %arg10[%c0_42, %c2, %c0_43, %c0_44] : memref<1x3x16x256xf32, #tpu.memory_space<vmem>>, vector<1x1x16x256xf32>
    %78 = vector.shape_cast %77 : vector<1x1x16x256xf32> to vector<16x256xf32>
    %79 = vector.shape_cast %76 : vector<16x256xf32> to vector<1x1x16x256xf32>
    tpu.vector_store %arg10[%c0_42, %c2, %c0_43, %c0_44], %79 {strides = array<i32>} : memref<1x3x16x256xf32, #tpu.memory_space<vmem>>, vector<1x1x16x256xf32>,
    return
  }
  func.func @transform_0(%arg0: i32, %arg1: i32) -> (i32, i32, i32) {
    %c0_i32 = arith.constant 0 : i32
    %c0_i32_0 = arith.constant 0 : i32
    return %arg0, %c0_i32, %arg1 : i32, i32, i32
  }
  func.func @transform_1(%arg0: i32, %arg1: i32) -> (i32, i32, i32) {
    %c0_i32 = arith.constant 0 : i32
    %c0_i32_0 = arith.constant 0 : i32
    return %arg0, %c0_i32, %arg1 : i32, i32, i32
  }
  func.func @transform_2(%arg0: i32, %arg1: i32) -> (i32, i32) {
    %c0_i32 = arith.constant 0 : i32
    %c0_i32_0 = arith.constant 0 : i32
    %c0_i32_1 = arith.constant 0 : i32
    return %c0_i32, %c0_i32_0 : i32, i32
  }
  func.func @transform_3(%arg0: i32, %arg1: i32) -> (i32, i32) {
    %c0_i32 = arith.constant 0 : i32
    %c0_i32_0 = arith.constant 0 : i32
    %c0_i32_1 = arith.constant 0 : i32
    return %c0_i32, %c0_i32_0 : i32, i32
  }
  func.func @transform_4(%arg0: i32, %arg1: i32) -> (i32, i32) {
    %c0_i32 = arith.constant 0 : i32
    %c0_i32_0 = arith.constant 0 : i32
    %c0_i32_1 = arith.constant 0 : i32
    return %c0_i32, %c0_i32_0 : i32, i32
  }
  func.func @transform_5(%arg0: i32, %arg1: i32) -> (i32, i32) {
    %c0_i32 = arith.constant 0 : i32
    %c0_i32_0 = arith.constant 0 : i32
    %c0_i32_1 = arith.constant 0 : i32
    return %c0_i32, %c0_i32_0 : i32, i32
  }
  func.func @transform_6(%arg0: i32, %arg1: i32) -> (i32, i32) {
    %c0_i32 = arith.constant 0 : i32
    %c0_i32_0 = arith.constant 0 : i32
    %c0_i32_1 = arith.constant 0 : i32
    return %c0_i32, %c0_i32_0 : i32, i32
  }
  func.func @transform_7(%arg0: i32, %arg1: i32) -> (i32, i32) {
    %c0_i32 = arith.constant 0 : i32
    %c0_i32_0 = arith.constant 0 : i32
    %c0_i32_1 = arith.constant 0 : i32
    return %c0_i32, %c0_i32_0 : i32, i32
  }
  func.func @transform_8(%arg0: i32, %arg1: i32) -> (i32, i32, i32, i32) {
    %c0_i32 = arith.constant 0 : i32
    %c0_i32_0 = arith.constant 0 : i32
    %c0_i32_1 = arith.constant 0 : i32
    return %arg0, %c0_i32, %c0_i32_0, %arg1 : i32, i32, i32, i32
  }
}

</mosaic_0001>

<llo_original>
// kernel: tpu_custom_call.1
$region0: #{tpu_custom_call.1}
  #allocation0 [shape = 'u32[]', space=smem, size = 0x4, offset = 0x4, fixed_abs, tag = 'smem constant byte address 0x4 - core index']
  #allocation1 [shape = 'u32[144,128]{1,0:T(1,128)}', space=vmem, size = 0x12000, scoped, tag = 'internal scratch']
  %s0 = inlined_call_operand.vmem [shape: f32[2,13,256], index: 0, kind: input, shape index: {}]
  %s1 = inlined_call_operand.vmem [shape: f32[2,1,256], index: 1, kind: input, shape index: {}]
  %s2 = inlined_call_operand.vmem [shape: f32[32,13], index: 2, kind: input, shape index: {}]
  %s3 = inlined_call_operand.vmem [shape: f32[32,1], index: 3, kind: input, shape index: {}]
  %s4 = inlined_call_operand.vmem [shape: f32[32,1], index: 4, kind: input, shape index: {}]
  %s5 = inlined_call_operand.vmem [shape: f32[16,32], index: 5, kind: input, shape index: {}]
  %s6 = inlined_call_operand.vmem [shape: f32[16,1], index: 6, kind: input, shape index: {}]
  %s7 = inlined_call_operand.vmem [shape: f32[32,1], index: 7, kind: input, shape index: {}]
  %s8 = inlined_call_operand.hbm [shape: f32[2,3,16,256], index: 8, kind: output, shape index: {}]
  %s9 = sld [smem:[#allocation0]]
  $region65: #{tpu_custom_call.1} parent=0
    _
  %s11 = ssub.s32 1, %s9
  %s12 = scalar_select 0, %s11, %s9
  $region1: #{tpu_custom_call.1} parent=0
    #allocation2 [shape = 'u8[98304]{0}', space=vmem, size = 0x18000, scoped, tag = 'output window, operand 0']
    #allocation3 [shape = 's32[2]{0}', space=sflag, size = 0x8, scoped, tag = 'scoped memory for tpu_custom_call.1']
    %13 = vsyncpa [#allocation3], 0
    %s14 = scalar_lea.sflag [#allocation3], 1
    %15 = vsyncpa %s14, 0
    loop: start=0, step=1, limit=4
    $region2: #{tpu_custom_call.1} parent=1 // loop_pre_header
      _
    $region3: #{tpu_custom_call.1} parent=1 // loop_header
      %s17 = sphi 0, %s21
      %p18 = scmp.ge.s32.totalorder %s17, 4
      %s24 = sphi 0, %s36
      %s25 = sphi 0, %s32
      %s26 = sphi 0, %s24
      %s27 = sphi 0, %s25
      %s28 = sphi 0, %s26
      %s29 = sphi 0, %s27
      %s41 = sphi 0, %s43
      %s44 = sphi 0, %s41
      %s45 = sphi 0, %s44
      %s61 = sphi 0, %s45
      %s69 = sphi 0, %s71
      %s72 = sphi 0, %s69
      %s73 = sphi 0, %s72
      %s89 = sphi 0, %s73
      %s93 = sphi 0, %s93
      %s95 = sphi 0, %s93
      %s96 = sphi 0, %s95
      %s110 = sphi 0, %s96
      %s114 = sphi 0, %s114
      %s116 = sphi 0, %s114
      %s117 = sphi 0, %s116
      %s131 = sphi 0, %s117
      %s135 = sphi 0, %s135
      %s137 = sphi 0, %s135
      %s138 = sphi 0, %s137
      %s152 = sphi 0, %s138
      %s156 = sphi 0, %s156
      %s158 = sphi 0, %s156
      %s159 = sphi 0, %s158
      %s173 = sphi 0, %s159
      %s177 = sphi 0, %s177
      %s179 = sphi 0, %s177
      %s180 = sphi 0, %s179
      %s194 = sphi 0, %s180
      %s198 = sphi 0, %s198
      %s200 = sphi 0, %s198
      %s201 = sphi 0, %s200
      %s215 = sphi 0, %s201
      %s223 = sphi 0, %s225
      %s226 = sphi 0, %s223
      %s227 = sphi 0, %s226
      %s243 = sphi 0, %s227
    $region4: #{tpu_custom_call.1} parent=1 // loop_header_branch
      %20 = sbr.rel (%p18) target = $region8
    $region5: #{tpu_custom_call.1} parent=1 // loop_body
      %s22 = ssub.s32 %s17, 1
      %s23 = ssub.s32 %s17, 2
      %s30 = sadd.s32 1, %s25
      %p31 = scmp.ge.s32.totalorder %s30, 1
      %s32 = scalar_select %p31, 0, %s30
      %s33 = sadd.s32 1, %s24
      %s34 = scalar_select %p31, %s33, %s24
      %p35 = scmp.ge.s32.totalorder %s34, 2
      %s36 = scalar_select %p35, 0, %s34
      %s37 = ssub.s32 %s24, %s36
      %s38 = ssub.s32 %s25, %s32
      %s39 = sor.u32 %s37, %s38
      %p40 = scmp.eq.s32.totalorder %s39, 0
      %s42 = sadd.s32 %s41, 1
      %s43 = scalar_select %p40, %s41, %s42
      %p46 = pneg %p40
      %p47 = scmp.eq.s32.totalorder %s17, 1
      %p48 = por %p46, %p47
      %p49 = scmp.ne.s32.totalorder %s41, %s44
      %p50 = scmp.eq.s32.totalorder %s17, 0
      %p51 = por %p49, %p50
      %p52 = scmp.ne.s32.totalorder %s41, %s44
      %p53 = scmp.eq.s32.totalorder %s22, 1
      %p54 = por %p52, %p53
      %p55 = scmp.ne.s32.totalorder %s44, %s45
      %p56 = scmp.eq.s32.totalorder %s22, 0
      %p57 = por %p55, %p56
      %p58 = scmp.ne.s32.totalorder %s44, %s45
      %p59 = scmp.eq.s32.totalorder %s23, 1
      %p60 = por %p58, %p59
      %p62 = scmp.ne.s32.totalorder %s45, %s61
      %p63 = scmp.eq.s32.totalorder %s23, 0
      %p64 = por %p62, %p63
      %s65 = ssub.s32 %s24, %s36
      %s66 = ssub.s32 %s25, %s32
      %s67 = sor.u32 %s65, %s66
      %p68 = scmp.eq.s32.totalorder %s67, 0
      %s70 = sadd.s32 %s69, 1
      %s71 = scalar_select %p68, %s69, %s70
      %p74 = pneg %p68
      %p75 = scmp.eq.s32.totalorder %s17, 1
      %p76 = por %p74, %p75
      %p77 = scmp.ne.s32.totalorder %s69, %s72
      %p78 = scmp.eq.s32.totalorder %s17, 0
      %p79 = por %p77, %p78
      %p80 = scmp.ne.s32.totalorder %s69, %s72
      %p81 = scmp.eq.s32.totalorder %s22, 1
      %p82 = por %p80, %p81
      %p83 = scmp.ne.s32.totalorder %s72, %s73
      %p84 = scmp.eq.s32.totalorder %s22, 0
      %p85 = por %p83, %p84
      %p86 = scmp.ne.s32.totalorder %s72, %s73
      %p87 = scmp.eq.s32.totalorder %s23, 1
      %p88 = por %p86, %p87
      %p90 = scmp.ne.s32.totalorder %s73, %s89
      %p91 = scmp.eq.s32.totalorder %s23, 0
      %p92 = por %p90, %p91
      %s94 = sadd.s32 %s93, 1
      %p97 = scmp.eq.s32.totalorder %s17, 1
      %p98 = scmp.ne.s32.totalorder %s93, %s95
      %p99 = scmp.eq.s32.totalorder %s17, 0
      %p100 = por %p98, %p99
      %p101 = scmp.ne.s32.totalorder %s93, %s95
      %p102 = scmp.eq.s32.totalorder %s22, 1
      %p103 = por %p101, %p102
      %p104 = scmp.ne.s32.totalorder %s95, %s96
      %p105 = scmp.eq.s32.totalorder %s22, 0
      %p106 = por %p104, %p105
      %p107 = scmp.ne.s32.totalorder %s95, %s96
      %p108 = scmp.eq.s32.totalorder %s23, 1
      %p109 = por %p107, %p108
      %p111 = scmp.ne.s32.totalorder %s96, %s110
      %p112 = scmp.eq.s32.totalorder %s23, 0
      %p113 = por %p111, %p112
      %s115 = sadd.s32 %s114, 1
      %p118 = scmp.eq.s32.totalorder %s17, 1
      %p119 = scmp.ne.s32.totalorder %s114, %s116
      %p120 = scmp.eq.s32.totalorder %s17, 0
      %p121 = por %p119, %p120
      %p122 = scmp.ne.s32.totalorder %s114, %s116
      %p123 = scmp.eq.s32.totalorder %s22, 1
      %p124 = por %p122, %p123
      %p125 = scmp.ne.s32.totalorder %s116, %s117
      %p126 = scmp.eq.s32.totalorder %s22, 0
      %p127 = por %p125, %p126
      %p128 = scmp.ne.s32.totalorder %s116, %s117
      %p129 = scmp.eq.s32.totalorder %s23, 1
      %p130 = por %p128, %p129
      %p132 = scmp.ne.s32.totalorder %s117, %s131
      %p133 = scmp.eq.s32.totalorder %s23, 0
      %p134 = por %p132, %p133
      %s136 = sadd.s32 %s135, 1
      %p139 = scmp.eq.s32.totalorder %s17, 1
      %p140 = scmp.ne.s32.totalorder %s135, %s137
      %p141 = scmp.eq.s32.totalorder %s17, 0
      %p142 = por %p140, %p141
      %p143 = scmp.ne.s32.totalorder %s135, %s137
      %p144 = scmp.eq.s32.totalorder %s22, 1
      %p145 = por %p143, %p144
      %p146 = scmp.ne.s32.totalorder %s137, %s138
      %p147 = scmp.eq.s32.totalorder %s22, 0
      %p148 = por %p146, %p147
      %p149 = scmp.ne.s32.totalorder %s137, %s138
      %p150 = scmp.eq.s32.totalorder %s23, 1
      %p151 = por %p149, %p150
      %p153 = scmp.ne.s32.totalorder %s138, %s152
      %p154 = scmp.eq.s32.totalorder %s23, 0
      %p155 = por %p153, %p154
      %s157 = sadd.s32 %s156, 1
      %p160 = scmp.eq.s32.totalorder %s17, 1
      %p161 = scmp.ne.s32.totalorder %s156, %s158
      %p162 = scmp.eq.s32.totalorder %s17, 0
      %p163 = por %p161, %p162
      %p164 = scmp.ne.s32.totalorder %s156, %s158
      %p165 = scmp.eq.s32.totalorder %s22, 1
      %p166 = por %p164, %p165
      %p167 = scmp.ne.s32.totalorder %s158, %s159
      %p168 = scmp.eq.s32.totalorder %s22, 0
      %p169 = por %p167, %p168
      %p170 = scmp.ne.s32.totalorder %s158, %s159
      %p171 = scmp.eq.s32.totalorder %s23, 1
      %p172 = por %p170, %p171
      %p174 = scmp.ne.s32.totalorder %s159, %s173
      %p175 = scmp.eq.s32.totalorder %s23, 0
      %p176 = por %p174, %p175
      %s178 = sadd.s32 %s177, 1
      %p181 = scmp.eq.s32.totalorder %s17, 1
      %p182 = scmp.ne.s32.totalorder %s177, %s179
      %p183 = scmp.eq.s32.totalorder %s17, 0
      %p184 = por %p182, %p183
      %p185 = scmp.ne.s32.totalorder %s177, %s179
      %p186 = scmp.eq.s32.totalorder %s22, 1
      %p187 = por %p185, %p186
      %p188 = scmp.ne.s32.totalorder %s179, %s180
      %p189 = scmp.eq.s32.totalorder %s22, 0
      %p190 = por %p188, %p189
      %p191 = scmp.ne.s32.totalorder %s179, %s180
      %p192 = scmp.eq.s32.totalorder %s23, 1
      %p193 = por %p191, %p192
      %p195 = scmp.ne.s32.totalorder %s180, %s194
      %p196 = scmp.eq.s32.totalorder %s23, 0
      %p197 = por %p195, %p196
      %s199 = sadd.s32 %s198, 1
      %p202 = scmp.eq.s32.totalorder %s17, 1
      %p203 = scmp.ne.s32.totalorder %s198, %s200
      %p204 = scmp.eq.s32.totalorder %s17, 0
      %p205 = por %p203, %p204
      %p206 = scmp.ne.s32.totalorder %s198, %s200
      %p207 = scmp.eq.s32.totalorder %s22, 1
      %p208 = por %p206, %p207
      %p209 = scmp.ne.s32.totalorder %s200, %s201
      %p210 = scmp.eq.s32.totalorder %s22, 0
      %p211 = por %p209, %p210
      %p212 = scmp.ne.s32.totalorder %s200, %s201
      %p213 = scmp.eq.s32.totalorder %s23, 1
      %p214 = por %p212, %p213
      %p216 = scmp.ne.s32.totalorder %s201, %s215
      %p217 = scmp.eq.s32.totalorder %s23, 0
      %p218 = por %p216, %p217
      %s219 = ssub.s32 %s24, %s36
      %s220 = ssub.s32 %s25, %s32
      %s221 = sor.u32 %s219, %s220
      %p222 = scmp.eq.s32.totalorder %s221, 0
      %s224 = sadd.s32 %s223, 1
      %s225 = scalar_select %p222, %s223, %s224
      %p228 = pneg %p222
      %p229 = scmp.eq.s32.totalorder %s17, 1
      %p230 = por %p228, %p229
      %p231 = scmp.ne.s32.totalorder %s223, %s226
      %p232 = scmp.eq.s32.totalorder %s17, 0
      %p233 = por %p231, %p232
      %p234 = scmp.ne.s32.totalorder %s223, %s226
      %p235 = scmp.eq.s32.totalorder %s22, 1
      %p236 = por %p234, %p235
      %p237 = scmp.ne.s32.totalorder %s226, %s227
      %p238 = scmp.eq.s32.totalorder %s22, 0
      %p239 = por %p237, %p238
      %p240 = scmp.ne.s32.totalorder %s226, %s227
      %p241 = scmp.eq.s32.totalorder %s23, 1
      %p242 = por %p240, %p241
      %p244 = scmp.ne.s32.totalorder %s227, %s243
      %p245 = scmp.eq.s32.totalorder %s23, 0
      %p246 = por %p244, %p245
      %p247 = scmp.le.s32.totalorder 1, %s17
      %p248 = scmp.lt.s32.totalorder %s17, 3
      %p249 = pnand %p247, %p248
      %p250 = pneg %p249
      // Predicated region
      $region9: #{tpu_custom_call.1} parent=5 // pred_check
        _
      $region10: #{tpu_custom_call.1} parent=5 // pred_check_branch
        %252 = sbr.rel (%p249) target = $region12
      $region11: #{tpu_custom_call.1} parent=5 // pred_region
        %s253 = ssub.s32 %s17, 1
        // Predicated region
        $region13: #{tpu_custom_call.1} parent=11 // pred_check
          %p254 = pneg %p106
        $region14: #{tpu_custom_call.1} parent=11 // pred_check_branch
          %256 = sbr.rel (%p254) target = $region16
        $region15: #{tpu_custom_call.1} parent=11 // pred_region
          _
        $region16: #{tpu_custom_call.1} parent=11 // pred_fallthru
          _
        // Predicated region
        $region17: #{tpu_custom_call.1} parent=11 // pred_check
          %p257 = pneg %p127
        $region18: #{tpu_custom_call.1} parent=11 // pred_check_branch
          %259 = sbr.rel (%p257) target = $region20
        $region19: #{tpu_custom_call.1} parent=11 // pred_region
          _
        $region20: #{tpu_custom_call.1} parent=11 // pred_fallthru
          _
        // Predicated region
        $region21: #{tpu_custom_call.1} parent=11 // pred_check
          %p260 = pneg %p148
        $region22: #{tpu_custom_call.1} parent=11 // pred_check_branch
          %262 = sbr.rel (%p260) target = $region24
        $region23: #{tpu_custom_call.1} parent=11 // pred_region
          _
        $region24: #{tpu_custom_call.1} parent=11 // pred_fallthru
          _
        // Predicated region
        $region25: #{tpu_custom_call.1} parent=11 // pred_check
          %p263 = pneg %p169
        $region26: #{tpu_custom_call.1} parent=11 // pred_check_branch
          %265 = sbr.rel (%p263) target = $region28
        $region27: #{tpu_custom_call.1} parent=11 // pred_region
          _
        $region28: #{tpu_custom_call.1} parent=11 // pred_fallthru
          _
        // Predicated region
        $region29: #{tpu_custom_call.1} parent=11 // pred_check
          %p266 = pneg %p190
        $region30: #{tpu_custom_call.1} parent=11 // pred_check_branch
          %268 = sbr.rel (%p266) target = $region32
        $region31: #{tpu_custom_call.1} parent=11 // pred_region
          _
        $region32: #{tpu_custom_call.1} parent=11 // pred_fallthru
          _
        // Predicated region
        $region33: #{tpu_custom_call.1} parent=11 // pred_check
          %p269 = pneg %p211
        $region34: #{tpu_custom_call.1} parent=11 // pred_check_branch
          %271 = sbr.rel (%p269) target = $region36
        $region35: #{tpu_custom_call.1} parent=11 // pred_region
          _
        $region36: #{tpu_custom_call.1} parent=11 // pred_fallthru
          _
      $region12: #{tpu_custom_call.1} parent=5 // pred_fallthru
        _
      %p272 = scmp.lt.s32.totalorder %s17, 2
      // Predicated region
      $region37: #{tpu_custom_call.1} parent=5 // pred_check
        %p273 = pneg %p272
      $region38: #{tpu_custom_call.1} parent=5 // pred_check_branch
        %275 = sbr.rel (%p273) target = $region40
      $region39: #{tpu_custom_call.1} parent=5 // pred_region
        // Predicated region
        $region41: #{tpu_custom_call.1} parent=39 // pred_check
          %p276 = pneg %p51
        $region42: #{tpu_custom_call.1} parent=39 // pred_check_branch
          %278 = sbr.rel (%p276) target = $region44
        $region43: #{tpu_custom_call.1} parent=39 // pred_region
          %s279 = smul.u32 2, %s25
          %p280 = scmp.lt.s32.totalorder %s24, 1
          %s281 = scalar_select %p280, %s24, 1
          %p282 = scmp.lt.s32.totalorder %s279, 1
          %s283 = scalar_select %p282, %s279, 1
          %s284 = smul.addr %s281, 4
          %s285 = sadd.s32 %s283, %s284
          %s286 = smul.addr %s285, 8
          %s287 = scalar_lea.vmem %s0, %s286
          %s288 = smul.u32 2, %s25
        $region44: #{tpu_custom_call.1} parent=39 // pred_fallthru
          _
        // Predicated region
        $region45: #{tpu_custom_call.1} parent=39 // pred_check
          %p289 = pneg %p79
        $region46: #{tpu_custom_call.1} parent=39 // pred_check_branch
          %291 = sbr.rel (%p289) target = $region48
        $region47: #{tpu_custom_call.1} parent=39 // pred_region
          %s292 = smul.u32 2, %s25
          %p293 = scmp.lt.s32.totalorder %s24, 1
          %s294 = scalar_select %p293, %s24, 1
          %p295 = scmp.lt.s32.totalorder %s292, 1
          %s296 = scalar_select %p295, %s292, 1
          %s297 = smul.addr %s294, 2
          %s298 = sadd.s32 %s296, %s297
          %s299 = scalar_lea.vmem %s1, %s298
          %s300 = smul.u32 2, %s25
        $region48: #{tpu_custom_call.1} parent=39 // pred_fallthru
          _
      $region40: #{tpu_custom_call.1} parent=5 // pred_fallthru
        _
      %p301 = scmp.le.s32.totalorder 1, %s17
      %p302 = scmp.lt.s32.totalorder %s17, 3
      %p303 = pnand %p301, %p302
      %p304 = pneg %p303
      // Predicated region
      $region49: #{tpu_custom_call.1} parent=5 // pred_check
        _
      $region50: #{tpu_custom_call.1} parent=5 // pred_check_branch
        %306 = sbr.rel (%p303) target = $region52
      $region51: #{tpu_custom_call.1} parent=5 // pred_region
        %s307 = ssub.s32 %s17, 1
        %s308 = smul.u32 2, %s27
        %p309 = scmp.lt.s32.totalorder %s26, 1
        %s310 = scalar_select %p309, %s26, 1
        %p311 = scmp.lt.s32.totalorder %s308, 1
        %s312 = scalar_select %p311, %s308, 1
        %s313 = smul.addr %s310, 4
        %s314 = sadd.s32 %s312, %s313
        %s315 = smul.addr %s314, 8
        %s316 = scalar_lea.vmem %s0, %s315
        %p317 = pneg %p57
        %p318 = pneg %p54
        %s319 = smul.u32 2, %s27
        %p320 = scmp.lt.s32.totalorder %s26, 1
        %s321 = scalar_select %p320, %s26, 1
        %p322 = scmp.lt.s32.totalorder %s319, 1
        %s323 = scalar_select %p322, %s319, 1
        %s324 = smul.addr %s321, 2
        %s325 = sadd.s32 %s323, %s324
        %s326 = scalar_lea.vmem %s1, %s325
        %p327 = pneg %p85
        %p328 = pneg %p82
        %p329 = pneg %p106
        %p330 = pneg %p103
        %p331 = pneg %p127
        %p332 = pneg %p124
        %p333 = pneg %p148
        %p334 = pneg %p145
        %p335 = pneg %p169
        %p336 = pneg %p166
        %p337 = pneg %p190
        %p338 = pneg %p187
        %p339 = pneg %p211
        %p340 = pneg %p208
        %p341 = pneg %p239
        %p342 = pneg %p236
        %s343 = sand.u32 %s226, 1
        %s344 = scalar_lea.sflag [#allocation3], %s343
        %s345 = sand.u32 %s226, 1
        %s346 = smul.addr %s345, 96
        %s347 = scalar_lea.vmem [#allocation2], %s346
        %s348 = smul.u32 2, %s27
        %p349 = scmp.lt.s32.totalorder %s26, 1
        %s350 = scalar_select %p349, %s26, 1
        %p351 = scmp.lt.s32.totalorder %s348, 1
        %s352 = scalar_select %p351, %s348, 1
        %s353 = smul.addr %s350, 4
        %s354 = sadd.s32 %s352, %s353
        %s355 = smul.addr %s354, 8
        %s356 = scalar_lea.vmem %s0, %s355
        %s357 = smul.u32 2, %s27
        %s358 = smul.u32 2, %s27
        %p359 = scmp.lt.s32.totalorder %s26, 1
        %s360 = scalar_select %p359, %s26, 1
        %p361 = scmp.lt.s32.totalorder %s358, 1
        %s362 = scalar_select %p361, %s358, 1
        %s363 = smul.addr %s360, 2
        %s364 = sadd.s32 %s362, %s363
        %s365 = scalar_lea.vmem %s1, %s364
        %s366 = smul.u32 2, %s27
        %s367 = smul.u32 2, %s27
        %v368 = vld [vmem:[%s356] sm:$0xff]
        %v369 = vld [vmem:[%s356 + $0x8] sm:$0xff]
        %v370 = vld [vmem:[%s356 + $0x10] sm:$0x1f]
        %v371 = vld [vmem:[%s356 + $0x18] sm:$0x1f]
        %v372 = vld [vmem:[%s4] sm:$0xff]
        %v373 = vld [vmem:[%s4 + $0x8] sm:$0xff]
        %v374 = vld [vmem:[%s4 + $0x10] sm:$0xff]
        %v375 = vld [vmem:[%s4 + $0x18] sm:$0xff]
        %v376 = vld [vmem:[%s2] sm:$0xff]
        %v377 = vld [vmem:[%s2 + $0x8] sm:$0xff]
        %v378 = vld [vmem:[%s2 + $0x10] sm:$0xff]
        %v379 = vld [vmem:[%s2 + $0x18] sm:$0xff]
        %381 = vset.pattern.permute.xlu0 0
        %382 = vperm.xlu0 %381, %v372
        %v383 = vpop.permute.xlu0 %382
        %386 = vset.pattern.permute.xlu0 0
        %387 = vperm.xlu0 %386, %v373
        %v388 = vpop.permute.xlu0 %387
        %391 = vset.pattern.permute.xlu0 0
        %392 = vperm.xlu0 %391, %v374
        %v393 = vpop.permute.xlu0 %392
        %396 = vset.pattern.permute.xlu0 0
        %397 = vperm.xlu0 %396, %v375
        %v398 = vpop.permute.xlu0 %397
        %vm400 = vcmask 105472
        %v402 = vsel %vm400, %v376, 0
        %v405 = vsel %vm400, %v377, 0
        %v408 = vsel %vm400, %v378, 0
        %v411 = vsel %vm400, %v379, 0
        %vm413 = vcmask 1044480
        %v415 = vsel %vm413, %v370, 0
        %v418 = vsel %vm413, %v371, 0
        %420 = vmatprep.subr.mxu0 %v369
        %421 = vmatpush1.msra.mxu0 %v368
        %422 = vmatprep.subr.mxu0 %v418
        %423 = vmatpush1.msra.mxu0 %v415
        %424 = vmatprep.subr.mxu0 0.0
        %425 = vmatpush1.msra.mxu0 0.0
        %426 = vmatprep.subr.mxu0 0.0
        %427 = vmatpush1.msra.mxu0 0.0
        %428 = vmatprep.subr.mxu0 0.0
        %429 = vmatpush1.msra.mxu0 0.0
        %430 = vmatprep.subr.mxu0 0.0
        %431 = vmatpush1.msra.mxu0 0.0
        %432 = vmatprep.subr.mxu0 0.0
        %433 = vmatpush1.msra.mxu0 0.0
        %434 = vmatprep.subr.mxu0 0.0
        %435 = vmatpush1.msra.mxu0 0.0
        %436 = vmatprep.subr.mxu0 0.0
        %437 = vmatpush1.msra.mxu0 0.0
        %438 = vmatprep.subr.mxu0 0.0
        %439 = vmatpush1.msra.mxu0 0.0
        %440 = vmatprep.subr.mxu0 0.0
        %441 = vmatpush1.msra.mxu0 0.0
        %442 = vmatprep.subr.mxu0 0.0
        %443 = vmatpush1.msra.mxu0 0.0
        %444 = vmatprep.subr.mxu0 0.0
        %445 = vmatpush1.msra.mxu0 0.0
        %446 = vmatprep.subr.mxu0 0.0
        %447 = vmatpush1.msra.mxu0 0.0
        %448 = vmatprep.subr.mxu0 0.0
        %449 = vmatpush1.msra.mxu0 0.0
        %450 = vmatprep.subr.mxu0 0.0
        %451 = vmatpush1.msra.mxu0 0.0
        %452 = vmatprep.subr.mxu0 0.0
        %453 = vmatpush1.msra.mxu0 0.0
        %454 = vmatprep.subr.mxu0 0.0
        %455 = vmatpush1.msra.mxu0 0.0
        %456 = vmatprep.subr.mxu0 0.0
        %457 = vmatpush1.msra.mxu0 0.0
        %458 = vmatprep.subr.mxu0 0.0
        %459 = vmatpush1.msra.mxu0 0.0
        %460 = vmatprep.subr.mxu0 0.0
        %461 = vmatpush1.msra.mxu0 0.0
        %462 = vmatprep.subr.mxu0 0.0
        %463 = vmatpush1.msra.mxu0 0.0
        %464 = vmatprep.subr.mxu0 0.0
        %465 = vmatpush1.msra.mxu0 0.0
        %466 = vmatprep.subr.mxu0 0.0
        %467 = vmatpush1.msra.mxu0 0.0
        %468 = vmatprep.subr.mxu0 0.0
        %469 = vmatpush1.msra.mxu0 0.0
        %470 = vmatprep.subr.mxu0 0.0
        %471 = vmatpush1.msra.mxu0 0.0
        %472 = vmatprep.subr.mxu0 0.0
        %473 = vmatpush1.msra.mxu0 0.0
        %474 = vmatprep.subr.mxu0 0.0
        %475 = vmatpush1.msra.mxu0 0.0
        %476 = vmatprep.subr.mxu0 0.0
        %477 = vmatpush1.msra.mxu0 0.0
        %478 = vmatprep.subr.mxu0 0.0
        %479 = vmatpush1.msra.mxu0 0.0
        %480 = vmatprep.subr.mxu0 0.0
        %481 = vmatpush1.msra.mxu0 0.0
        %482 = vmatprep.subr.mxu0 0.0
        %483 = vmatpush1.msra.mxu0 0.0
        %484 = vmatprep.mubr.f32.mxu0 0.0
        %485 = vmatmul.mubr.f32.gmra.mrb[0].mxu0 %v402
        %v486 = vpop.f32.mrb[0].mxu0
        %v487 = vadd.f32 %v383, %v486
        %v488 = vpop.f32.mrb[0].mxu0
        %v489 = vadd.f32 %v383, %v488
        %490 = vmatprep.mubr.f32.mxu0 0.0
        %491 = vmatmul.mubr.f32.gmra.mrb[0].mxu0 %v405
        %v492 = vpop.f32.mrb[0].mxu0
        %v493 = vadd.f32 %v388, %v492
        %v494 = vpop.f32.mrb[0].mxu0
        %v495 = vadd.f32 %v388, %v494
        %496 = vmatprep.mubr.f32.mxu0 0.0
        %497 = vmatmul.mubr.f32.gmra.mrb[0].mxu0 %v408
        %v498 = vpop.f32.mrb[0].mxu0
        %v499 = vadd.f32 %v393, %v498
        %v500 = vpop.f32.mrb[0].mxu0
        %v501 = vadd.f32 %v393, %v500
        %502 = vmatprep.mubr.f32.mxu0 0.0
        %503 = vmatmul.mubr.f32.gmra.mrb[0].mxu0 %v411
        %v504 = vpop.f32.mrb[0].mxu0
        %v505 = vadd.f32 %v398, %v504
        %v506 = vpop.f32.mrb[0].mxu0
        %v507 = vadd.f32 %v398, %v506
        %508 = vdwg.mxu0
        %v509 = vmax.f32 %v487, 0.0
        %v510 = vmax.f32 %v489, 0.0
        %v511 = vmax.f32 %v493, 0.0
        %v512 = vmax.f32 %v495, 0.0
        %v513 = vmax.f32 %v499, 0.0
        %v514 = vmax.f32 %v501, 0.0
        %v515 = vmax.f32 %v505, 0.0
        %v516 = vmax.f32 %v507, 0.0
        %v517 = vmul.f32 %v509, %v509
        %v518 = vmul.f32 %v510, %v510
        %v519 = vmul.f32 %v511, %v511
        %v520 = vmul.f32 %v512, %v512
        %v521 = vmul.f32 %v513, %v513
        %v522 = vmul.f32 %v514, %v514
        %v523 = vmul.f32 %v515, %v515
        %v524 = vmul.f32 %v516, %v516
        %v525 = vadd.f32 %v517, %v519
        %v526 = vadd.f32 %v525, %v521
        %v527 = vadd.f32 %v526, %v523
        %v528 = vrot.slane %v527, 4
        %v529 = vadd.f32 %v527, %v528
        %v530 = vrot.slane %v529, 2
        %v531 = vadd.f32 %v529, %v530
        %v532 = vrot.slane %v531, 1
        %v533 = vadd.f32 %v531, %v532
        %v534 = vadd.f32 %v518, %v520
        %v535 = vadd.f32 %v534, %v522
        %v536 = vadd.f32 %v535, %v524
        %v537 = vrot.slane %v536, 4
        %v538 = vadd.f32 %v536, %v537
        %v539 = vrot.slane %v538, 2
        %v540 = vadd.f32 %v538, %v539
        %v541 = vrot.slane %v540, 1
        %v542 = vadd.f32 %v540, %v541
        %v543 = vadd.f32 %v533, 1e-06
        %v544 = vadd.f32 %v542, 1e-06
        %v545 = vrsqrt.pop %v543
        %v546 = vrsqrt.pop %v544
        %v547 = vmul.f32 %v509, %v545
        %v548 = vmul.f32 %v510, %v546
        %v549 = vmul.f32 %v511, %v545
        %v550 = vmul.f32 %v512, %v546
        %v551 = vmul.f32 %v513, %v545
        %v552 = vmul.f32 %v514, %v546
        %v553 = vmul.f32 %v515, %v545
        %v554 = vmul.f32 %v516, %v546
        %v555 = vld [vmem:[%s365] sm:$0x3]
        %v556 = vld [vmem:[%s3] sm:$0xff]
        %v557 = vld [vmem:[%s3 + $0x8] sm:$0xff]
        %v558 = vld [vmem:[%s3 + $0x10] sm:$0xff]
        %v559 = vld [vmem:[%s3 + $0x18] sm:$0xff]
        %v560 = vld [vmem:[%s7] sm:$0xff]
        %v561 = vld [vmem:[%s7 + $0x8] sm:$0xff]
        %v562 = vld [vmem:[%s7 + $0x10] sm:$0xff]
        %v563 = vld [vmem:[%s7 + $0x18] sm:$0xff]
        %v564 = vld [vmem:[%s5] sm:$0xff]
        %v565 = vld [vmem:[%s5 + $0x8] sm:$0xff]
        %v566 = vld [vmem:[%s6] sm:$0xff]
        %v567 = vld [vmem:[%s6 + $0x8] sm:$0xff]
        %vm568 = vcmp.eq.f32.partialorder %v555, 0.0
        %v569 = vsel %vm568, %v555, -1.0
        %v571 = vlaneseq
        %v572 = vshrl.u32 %v571, 7
        %v573 = vsub.s32 0, %v572
        %v574 = vrot.slane %v569, %v573
        %v575 = vlaneseq
        %v576 = vshrl.u32 %v575, 7
        %v577 = vsub.s32 1, %v576
        %v578 = vrot.slane %v569, %v577
        %582 = vset.pattern.permute.xlu0 0
        %583 = vperm.xlu0 %582, %v556
        %v584 = vpop.permute.xlu0 %583
        %587 = vset.pattern.permute.xlu0 0
        %588 = vperm.xlu0 %587, %v557
        %v589 = vpop.permute.xlu0 %588
        %592 = vset.pattern.permute.xlu0 0
        %593 = vperm.xlu0 %592, %v558
        %v594 = vpop.permute.xlu0 %593
        %597 = vset.pattern.permute.xlu0 0
        %598 = vperm.xlu0 %597, %v559
        %v599 = vpop.permute.xlu0 %598
        %v601 = vmul.f32 %v574, %v584
        %v602 = vmul.f32 %v578, %v584
        %v603 = vmul.f32 %v574, %v589
        %v604 = vmul.f32 %v578, %v589
        %v605 = vmul.f32 %v574, %v594
        %v606 = vmul.f32 %v578, %v594
        %v607 = vmul.f32 %v574, %v599
        %v608 = vmul.f32 %v578, %v599
        %610 = vset.pattern.permute.xlu0 0
        %611 = vperm.xlu0 %610, %v560
        %v612 = vpop.permute.xlu0 %611
        %615 = vset.pattern.permute.xlu0 0
        %616 = vperm.xlu0 %615, %v561
        %v617 = vpop.permute.xlu0 %616
        %620 = vset.pattern.permute.xlu0 0
        %621 = vperm.xlu0 %620, %v562
        %v622 = vpop.permute.xlu0 %621
        %625 = vset.pattern.permute.xlu0 0
        %626 = vperm.xlu0 %625, %v563
        %v627 = vpop.permute.xlu0 %626
        %vm629 = vcmp.ge.f32.partialorder %v601, %v612
        %vm630 = vcmp.ge.f32.partialorder %v602, %v612
        %vm631 = vcmp.ge.f32.partialorder %v603, %v617
        %vm632 = vcmp.ge.f32.partialorder %v604, %v617
        %vm633 = vcmp.ge.f32.partialorder %v605, %v622
        %vm634 = vcmp.ge.f32.partialorder %v606, %v622
        %vm635 = vcmp.ge.f32.partialorder %v607, %v627
        %vm636 = vcmp.ge.f32.partialorder %v608, %v627
        %v637 = vsel %vm629, %v547, 0.0
        %v638 = vsel %vm630, %v548, 0.0
        %v639 = vsel %vm631, %v549, 0.0
        %v640 = vsel %vm632, %v550, 0.0
        %v641 = vsel %vm633, %v551, 0.0
        %v642 = vsel %vm634, %v552, 0.0
        %v643 = vsel %vm635, %v553, 0.0
        %v644 = vsel %vm636, %v554, 0.0
        %646 = vset.pattern.permute.xlu0 0
        %647 = vperm.xlu0 %646, %v566
        %v648 = vpop.permute.xlu0 %647
        %651 = vset.pattern.permute.xlu0 0
        %652 = vperm.xlu0 %651, %v567
        %v653 = vpop.permute.xlu0 %652
        %vm655 = vcmask 261120
        %v657 = vsel %vm655, %v564, 0
        %v660 = vsel %vm655, %v565, 0
        %662 = vmatprep.subr.mxu0 %v638
        %663 = vmatpush1.msra.mxu0 %v637
        %664 = vmatprep.subr.mxu0 %v640
        %665 = vmatpush1.msra.mxu0 %v639
        %666 = vmatprep.subr.mxu0 %v642
        %667 = vmatpush1.msra.mxu0 %v641
        %668 = vmatprep.subr.mxu0 %v644
        %669 = vmatpush1.msra.mxu0 %v643
        %670 = vmatprep.subr.mxu0 0.0
        %671 = vmatpush1.msra.mxu0 0.0
        %672 = vmatprep.subr.mxu0 0.0
        %673 = vmatpush1.msra.mxu0 0.0
        %674 = vmatprep.subr.mxu0 0.0
        %675 = vmatpush1.msra.mxu0 0.0
        %676 = vmatprep.subr.mxu0 0.0
        %677 = vmatpush1.msra.mxu0 0.0
        %678 = vmatprep.subr.mxu0 0.0
        %679 = vmatpush1.msra.mxu0 0.0
        %680 = vmatprep.subr.mxu0 0.0
        %681 = vmatpush1.msra.mxu0 0.0
        %682 = vmatprep.subr.mxu0 0.0
        %683 = vmatpush1.msra.mxu0 0.0
        %684 = vmatprep.subr.mxu0 0.0
        %685 = vmatpush1.msra.mxu0 0.0
        %686 = vmatprep.subr.mxu0 0.0
        %687 = vmatpush1.msra.mxu0 0.0
        %688 = vmatprep.subr.mxu0 0.0
        %689 = vmatpush1.msra.mxu0 0.0
        %690 = vmatprep.subr.mxu0 0.0
        %691 = vmatpush1.msra.mxu0 0.0
        %692 = vmatprep.subr.mxu0 0.0
        %693 = vmatpush1.msra.mxu0 0.0
        %694 = vmatprep.subr.mxu0 0.0
        %695 = vmatpush1.msra.mxu0 0.0
        %696 = vmatprep.subr.mxu0 0.0
        %697 = vmatpush1.msra.mxu0 0.0
        %698 = vmatprep.subr.mxu0 0.0
        %699 = vmatpush1.msra.mxu0 0.0
        %700 = vmatprep.subr.mxu0 0.0
        %701 = vmatpush1.msra.mxu0 0.0
        %702 = vmatprep.subr.mxu0 0.0
        %703 = vmatpush1.msra.mxu0 0.0
        %704 = vmatprep.subr.mxu0 0.0
        %705 = vmatpush1.msra.mxu0 0.0
        %706 = vmatprep.subr.mxu0 0.0
        %707 = vmatpush1.msra.mxu0 0.0
        %708 = vmatprep.subr.mxu0 0.0
        %709 = vmatpush1.msra.mxu0 0.0
        %710 = vmatprep.subr.mxu0 0.0
        %711 = vmatpush1.msra.mxu0 0.0
        %712 = vmatprep.subr.mxu0 0.0
        %713 = vmatpush1.msra.mxu0 0.0
        %714 = vmatprep.subr.mxu0 0.0
        %715 = vmatpush1.msra.mxu0 0.0
        %716 = vmatprep.subr.mxu0 0.0
        %717 = vmatpush1.msra.mxu0 0.0
        %718 = vmatprep.subr.mxu0 0.0
        %719 = vmatpush1.msra.mxu0 0.0
        %720 = vmatprep.subr.mxu0 0.0
        %721 = vmatpush1.msra.mxu0 0.0
        %722 = vmatprep.subr.mxu0 0.0
        %723 = vmatpush1.msra.mxu0 0.0
        %724 = vmatprep.subr.mxu0 0.0
        %725 = vmatpush1.msra.mxu0 0.0
        %726 = vmatprep.mubr.f32.mxu0 0.0
        %727 = vmatmul.mubr.f32.gmra.mrb[0].mxu0 %v657
        %v728 = vpop.f32.mrb[0].mxu0
        %v729 = vadd.f32 %v648, %v728
        %v730 = vpop.f32.mrb[0].mxu0
        %v731 = vadd.f32 %v648, %v730
        %732 = vmatprep.mubr.f32.mxu0 0.0
        %733 = vmatmul.mubr.f32.gmra.mrb[0].mxu0 %v660
        %v734 = vpop.f32.mrb[0].mxu0
        %v735 = vadd.f32 %v653, %v734
        %v736 = vpop.f32.mrb[0].mxu0
        %v737 = vadd.f32 %v653, %v736
        %738 = vdwg.mxu0
        %v739 = vmax.f32 %v729, 0.0
        %v740 = vmax.f32 %v731, 0.0
        %v741 = vmax.f32 %v735, 0.0
        %v742 = vmax.f32 %v737, 0.0
        %743 = vst [vmem:[%s347] sm:$0xff] %v739
        %744 = vst [vmem:[%s347 + $0x8] sm:$0xff] %v740
        %745 = vst [vmem:[%s347 + $0x10] sm:$0xff] %v741
        %746 = vst [vmem:[%s347 + $0x18] sm:$0xff] %v742
        %vm747 = vcmp.eq.f32.partialorder %v555, 1.0
        %v748 = vsel %vm747, %v555, -1.0
        %v750 = vlaneseq
        %v751 = vshrl.u32 %v750, 7
        %v752 = vsub.s32 0, %v751
        %v753 = vrot.slane %v748, %v752
        %v754 = vlaneseq
        %v755 = vshrl.u32 %v754, 7
        %v756 = vsub.s32 1, %v755
        %v757 = vrot.slane %v748, %v756
        %v760 = vmul.f32 %v753, %v584
        %v761 = vmul.f32 %v757, %v584
        %v762 = vmul.f32 %v753, %v589
        %v763 = vmul.f32 %v757, %v589
        %v764 = vmul.f32 %v753, %v594
        %v765 = vmul.f32 %v757, %v594
        %v766 = vmul.f32 %v753, %v599
        %v767 = vmul.f32 %v757, %v599
        %vm768 = vcmp.ge.f32.partialorder %v760, %v612
        %vm769 = vcmp.ge.f32.partialorder %v761, %v612
        %vm770 = vcmp.ge.f32.partialorder %v762, %v617
        %vm771 = vcmp.ge.f32.partialorder %v763, %v617
        %vm772 = vcmp.ge.f32.partialorder %v764, %v622
        %vm773 = vcmp.ge.f32.partialorder %v765, %v622
        %vm774 = vcmp.ge.f32.partialorder %v766, %v627
        %vm775 = vcmp.ge.f32.partialorder %v767, %v627
        %v776 = vsel %vm768, %v547, 0.0
        %v777 = vsel %vm769, %v548, 0.0
        %v778 = vsel %vm770, %v549, 0.0
        %v779 = vsel %vm771, %v550, 0.0
        %v780 = vsel %vm772, %v551, 0.0
        %v781 = vsel %vm773, %v552, 0.0
        %v782 = vsel %vm774, %v553, 0.0
        %v783 = vsel %vm775, %v554, 0.0
        %784 = vmatprep.subr.mxu0 %v777
        %785 = vmatpush1.msra.mxu0 %v776
        %786 = vmatprep.subr.mxu0 %v779
        %787 = vmatpush1.msra.mxu0 %v778
        %788 = vmatprep.subr.mxu0 %v781
        %789 = vmatpush1.msra.mxu0 %v780
        %790 = vmatprep.subr.mxu0 %v783
        %791 = vmatpush1.msra.mxu0 %v782
        %792 = vmatprep.subr.mxu0 0.0
        %793 = vmatpush1.msra.mxu0 0.0
        %794 = vmatprep.subr.mxu0 0.0
        %795 = vmatpush1.msra.mxu0 0.0
        %796 = vmatprep.subr.mxu0 0.0
        %797 = vmatpush1.msra.mxu0 0.0
        %798 = vmatprep.subr.mxu0 0.0
        %799 = vmatpush1.msra.mxu0 0.0
        %800 = vmatprep.subr.mxu0 0.0
        %801 = vmatpush1.msra.mxu0 0.0
        %802 = vmatprep.subr.mxu0 0.0
        %803 = vmatpush1.msra.mxu0 0.0
        %804 = vmatprep.subr.mxu0 0.0
        %805 = vmatpush1.msra.mxu0 0.0
        %806 = vmatprep.subr.mxu0 0.0
        %807 = vmatpush1.msra.mxu0 0.0
        %808 = vmatprep.subr.mxu0 0.0
        %809 = vmatpush1.msra.mxu0 0.0
        %810 = vmatprep.subr.mxu0 0.0
        %811 = vmatpush1.msra.mxu0 0.0
        %812 = vmatprep.subr.mxu0 0.0
        %813 = vmatpush1.msra.mxu0 0.0
        %814 = vmatprep.subr.mxu0 0.0
        %815 = vmatpush1.msra.mxu0 0.0
        %816 = vmatprep.subr.mxu0 0.0
        %817 = vmatpush1.msra.mxu0 0.0
        %818 = vmatprep.subr.mxu0 0.0
        %819 = vmatpush1.msra.mxu0 0.0
        %820 = vmatprep.subr.mxu0 0.0
        %821 = vmatpush1.msra.mxu0 0.0
        %822 = vmatprep.subr.mxu0 0.0
        %823 = vmatpush1.msra.mxu0 0.0
        %824 = vmatprep.subr.mxu0 0.0
        %825 = vmatpush1.msra.mxu0 0.0
        %826 = vmatprep.subr.mxu0 0.0
        %827 = vmatpush1.msra.mxu0 0.0
        %828 = vmatprep.subr.mxu0 0.0
        %829 = vmatpush1.msra.mxu0 0.0
        %830 = vmatprep.subr.mxu0 0.0
        %831 = vmatpush1.msra.mxu0 0.0
        %832 = vmatprep.subr.mxu0 0.0
        %833 = vmatpush1.msra.mxu0 0.0
        %834 = vmatprep.subr.mxu0 0.0
        %835 = vmatpush1.msra.mxu0 0.0
        %836 = vmatprep.subr.mxu0 0.0
        %837 = vmatpush1.msra.mxu0 0.0
        %838 = vmatprep.subr.mxu0 0.0
        %839 = vmatpush1.msra.mxu0 0.0
        %840 = vmatprep.subr.mxu0 0.0
        %841 = vmatpush1.msra.mxu0 0.0
        %842 = vmatprep.subr.mxu0 0.0
        %843 = vmatpush1.msra.mxu0 0.0
        %844 = vmatprep.subr.mxu0 0.0
        %845 = vmatpush1.msra.mxu0 0.0
        %846 = vmatprep.subr.mxu0 0.0
        %847 = vmatpush1.msra.mxu0 0.0
        %848 = vmatprep.mubr.f32.mxu0 0.0
        %849 = vmatmul.mubr.f32.gmra.mrb[0].mxu0 %v657
        %v850 = vpop.f32.mrb[0].mxu0
        %v851 = vadd.f32 %v648, %v850
        %v852 = vpop.f32.mrb[0].mxu0
        %v853 = vadd.f32 %v648, %v852
        %854 = vmatprep.mubr.f32.mxu0 0.0
        %855 = vmatmul.mubr.f32.gmra.mrb[0].mxu0 %v660
        %v856 = vpop.f32.mrb[0].mxu0
        %v857 = vadd.f32 %v653, %v856
        %v858 = vpop.f32.mrb[0].mxu0
        %v859 = vadd.f32 %v653, %v858
        %860 = vdwg.mxu0
        %v861 = vmax.f32 %v851, 0.0
        %v862 = vmax.f32 %v853, 0.0
        %v863 = vmax.f32 %v857, 0.0
        %v864 = vmax.f32 %v859, 0.0
        %s865 = scalar_lea.vmem %s347, 32 [#allocation2]
        %866 = vst [vmem:[%s865] sm:$0xff] %v861
        %867 = vst [vmem:[%s865 + $0x8] sm:$0xff] %v862
        %868 = vst [vmem:[%s865 + $0x10] sm:$0xff] %v863
        %869 = vst [vmem:[%s865 + $0x18] sm:$0xff] %v864
        %vm870 = vcmp.eq.f32.partialorder %v555, 2.0
        %v871 = vsel %vm870, %v555, -1.0
        %v873 = vlaneseq
        %v874 = vshrl.u32 %v873, 7
        %v875 = vsub.s32 0, %v874
        %v876 = vrot.slane %v871, %v875
        %v877 = vlaneseq
        %v878 = vshrl.u32 %v877, 7
        %v879 = vsub.s32 1, %v878
        %v880 = vrot.slane %v871, %v879
        %v883 = vmul.f32 %v876, %v584
        %v884 = vmul.f32 %v880, %v584
        %v885 = vmul.f32 %v876, %v589
        %v886 = vmul.f32 %v880, %v589
        %v887 = vmul.f32 %v876, %v594
        %v888 = vmul.f32 %v880, %v594
        %v889 = vmul.f32 %v876, %v599
        %v890 = vmul.f32 %v880, %v599
        %vm891 = vcmp.ge.f32.partialorder %v883, %v612
        %vm892 = vcmp.ge.f32.partialorder %v884, %v612
        %vm893 = vcmp.ge.f32.partialorder %v885, %v617
        %vm894 = vcmp.ge.f32.partialorder %v886, %v617
        %vm895 = vcmp.ge.f32.partialorder %v887, %v622
        %vm896 = vcmp.ge.f32.partialorder %v888, %v622
        %vm897 = vcmp.ge.f32.partialorder %v889, %v627
        %vm898 = vcmp.ge.f32.partialorder %v890, %v627
        %v899 = vsel %vm891, %v547, 0.0
        %v900 = vsel %vm892, %v548, 0.0
        %v901 = vsel %vm893, %v549, 0.0
        %v902 = vsel %vm894, %v550, 0.0
        %v903 = vsel %vm895, %v551, 0.0
        %v904 = vsel %vm896, %v552, 0.0
        %v905 = vsel %vm897, %v553, 0.0
        %v906 = vsel %vm898, %v554, 0.0
        %907 = vmatprep.subr.mxu0 %v900
        %908 = vmatpush1.msra.mxu0 %v899
        %909 = vmatprep.subr.mxu0 %v902
        %910 = vmatpush1.msra.mxu0 %v901
        %911 = vmatprep.subr.mxu0 %v904
        %912 = vmatpush1.msra.mxu0 %v903
        %913 = vmatprep.subr.mxu0 %v906
        %914 = vmatpush1.msra.mxu0 %v905
        %915 = vmatprep.subr.mxu0 0.0
        %916 = vmatpush1.msra.mxu0 0.0
        %917 = vmatprep.subr.mxu0 0.0
        %918 = vmatpush1.msra.mxu0 0.0
        %919 = vmatprep.subr.mxu0 0.0
        %920 = vmatpush1.msra.mxu0 0.0
        %921 = vmatprep.subr.mxu0 0.0
        %922 = vmatpush1.msra.mxu0 0.0
        %923 = vmatprep.subr.mxu0 0.0
        %924 = vmatpush1.msra.mxu0 0.0
        %925 = vmatprep.subr.mxu0 0.0
        %926 = vmatpush1.msra.mxu0 0.0
        %927 = vmatprep.subr.mxu0 0.0
        %928 = vmatpush1.msra.mxu0 0.0
        %929 = vmatprep.subr.mxu0 0.0
        %930 = vmatpush1.msra.mxu0 0.0
        %931 = vmatprep.subr.mxu0 0.0
        %932 = vmatpush1.msra.mxu0 0.0
        %933 = vmatprep.subr.mxu0 0.0
        %934 = vmatpush1.msra.mxu0 0.0
        %935 = vmatprep.subr.mxu0 0.0
        %936 = vmatpush1.msra.mxu0 0.0
        %937 = vmatprep.subr.mxu0 0.0
        %938 = vmatpush1.msra.mxu0 0.0
        %939 = vmatprep.subr.mxu0 0.0
        %940 = vmatpush1.msra.mxu0 0.0
        %941 = vmatprep.subr.mxu0 0.0
        %942 = vmatpush1.msra.mxu0 0.0
        %943 = vmatprep.subr.mxu0 0.0
        %944 = vmatpush1.msra.mxu0 0.0
        %945 = vmatprep.subr.mxu0 0.0
        %946 = vmatpush1.msra.mxu0 0.0
        %947 = vmatprep.subr.mxu0 0.0
        %948 = vmatpush1.msra.mxu0 0.0
        %949 = vmatprep.subr.mxu0 0.0
        %950 = vmatpush1.msra.mxu0 0.0
        %951 = vmatprep.subr.mxu0 0.0
        %952 = vmatpush1.msra.mxu0 0.0
        %953 = vmatprep.subr.mxu0 0.0
        %954 = vmatpush1.msra.mxu0 0.0
        %955 = vmatprep.subr.mxu0 0.0
        %956 = vmatpush1.msra.mxu0 0.0
        %957 = vmatprep.subr.mxu0 0.0
        %958 = vmatpush1.msra.mxu0 0.0
        %959 = vmatprep.subr.mxu0 0.0
        %960 = vmatpush1.msra.mxu0 0.0
        %961 = vmatprep.subr.mxu0 0.0
        %962 = vmatpush1.msra.mxu0 0.0
        %963 = vmatprep.subr.mxu0 0.0
        %964 = vmatpush1.msra.mxu0 0.0
        %965 = vmatprep.subr.mxu0 0.0
        %966 = vmatpush1.msra.mxu0 0.0
        %967 = vmatprep.subr.mxu0 0.0
        %968 = vmatpush1.msra.mxu0 0.0
        %969 = vmatprep.subr.mxu0 0.0
        %970 = vmatpush1.msra.mxu0 0.0
        %971 = vmatprep.mubr.f32.mxu0 0.0
        %972 = vmatmul.mubr.f32.gmra.mrb[0].mxu0 %v657
        %v973 = vpop.f32.mrb[0].mxu0
        %v974 = vadd.f32 %v648, %v973
        %v975 = vpop.f32.mrb[0].mxu0
        %v976 = vadd.f32 %v648, %v975
        %977 = vmatprep.mubr.f32.mxu0 0.0
        %978 = vmatmul.mubr.f32.gmra.mrb[0].mxu0 %v660
        %v979 = vpop.f32.mrb[0].mxu0
        %v980 = vadd.f32 %v653, %v979
        %v981 = vpop.f32.mrb[0].mxu0
        %v982 = vadd.f32 %v653, %v981
        %983 = vdwg.mxu0
        %v984 = vmax.f32 %v974, 0.0
        %v985 = vmax.f32 %v976, 0.0
        %v986 = vmax.f32 %v980, 0.0
        %v987 = vmax.f32 %v982, 0.0
        %s988 = scalar_lea.vmem %s347, 64 [#allocation2]
        %989 = vst [vmem:[%s988] sm:$0xff] %v984
        %990 = vst [vmem:[%s988 + $0x8] sm:$0xff] %v985
        %991 = vst [vmem:[%s988 + $0x10] sm:$0xff] %v986
        %992 = vst [vmem:[%s988 + $0x18] sm:$0xff] %v987
        %s993 = sand.u32 %s226, 1
        %s994 = scalar_lea.sflag [#allocation3], %s993
        %s995 = sand.u32 %s226, 1
        %s996 = smul.addr %s995, 96
        %s997 = scalar_lea.vmem [#allocation2], %s996
        // Predicated region
        $region53: #{tpu_custom_call.1} parent=51 // pred_check
          %p998 = pneg %p236
        $region54: #{tpu_custom_call.1} parent=51 // pred_check_branch
          %1000 = sbr.rel (%p998) target = $region56
        $region55: #{tpu_custom_call.1} parent=51 // pred_region
          %s1001 = smul.u32 2, %s27
          %s1003 = ssub.s32 1536, 1536
          %1004 = vsyncadd %s994, %s1003
          %s1005 = smul.addr %s26, 12
          %s1006 = sadd.s32 %s1001, %s1005
          %s1007 = smul.addr %s1006, 128
          %s1008 = scalar_lea.hbm %s8, %s1007
          %s1009 = sshll.u32 %s997, 4
          %s1010 = int_to_ptr.vmem [resolvable:$true] %s1009
          %1015 = dma.vmem_to_hbm [thread:$0]  %s1010, 1536, %s1008, %s994, 256, 256, 16
        $region56: #{tpu_custom_call.1} parent=51 // pred_fallthru
          _
      $region52: #{tpu_custom_call.1} parent=5 // pred_fallthru
        _
      %p1016 = scmp.le.s32.totalorder 2, %s17
      // Predicated region
      $region57: #{tpu_custom_call.1} parent=5 // pred_check
        %p1017 = pneg %p1016
      $region58: #{tpu_custom_call.1} parent=5 // pred_check_branch
        %1019 = sbr.rel (%p1017) target = $region60
      $region59: #{tpu_custom_call.1} parent=5 // pred_region
        %s1020 = ssub.s32 %s17, 2
        // Predicated region
        $region61: #{tpu_custom_call.1} parent=59 // pred_check
          %p1021 = pneg %p242
        $region62: #{tpu_custom_call.1} parent=59 // pred_check_branch
          %1023 = sbr.rel (%p1021) target = $region64
        $region63: #{tpu_custom_call.1} parent=59 // pred_region
          %s1024 = sand.u32 %s227, 1
          %s1025 = scalar_lea.sflag [#allocation3], %s1024
          %s1026 = sand.u32 %s227, 1
          %s1027 = smul.addr %s1026, 96
          %s1028 = scalar_lea.vmem [#allocation2], %s1027
          %1029 = dma.done %s1025, 1536
        $region64: #{tpu_custom_call.1} parent=59 // pred_fallthru
          _
      $region60: #{tpu_custom_call.1} parent=5 // pred_fallthru
        _
    $region6: #{tpu_custom_call.1} parent=1 // loop_footer
      %s21 = sadd.s32 1, %s17
    $region7: #{tpu_custom_call.1} parent=1 // loop_footer_branch
      %16 = sbr.rel target = $region3
    $region8: #{tpu_custom_call.1} parent=1 // loop_exit
      _
    %1030 = vsyncpa [#allocation3], 1
    %s1031 = scalar_lea.sflag [#allocation3], 1
    %1032 = vsyncpa %s1031, 1

</llo_original>
